<compile_context>
chip_gen: v6e
topology: v6e:2x2x1
jax: 0.10.0
libtpu: 0.0.40
codegen_flags: <defaults>
</compile_context>

<pallas_src>
import functools
import math

import jax
import jax.numpy as jnp
from jax import lax
from jax.experimental import pallas as pl
from jax.experimental.pallas import tpu as pltpu


def _round_up(x, m):
    return ((x + m - 1) // m) * m


def _linear_kernel(x_ref, w_ref, b_ref, o_ref, *, d_valid, mask_k):
    # x_ref: (tm, tk)   w_ref: (2, tk)   b_ref: (1, 2)   o_ref: (tm, 2) f32
    k = pl.program_id(1)

    @pl.when(k == 0)
    def _():
        # Output block stays resident in VMEM across the k axis (index_map
        # ignores k): seed it with the bias, accumulate in place, no epilogue.
        o_ref[...] = jnp.broadcast_to(b_ref[...], o_ref.shape).astype(o_ref.dtype)

    x = x_ref[...]
    w = w_ref[...]
    if mask_k:  # static: D is not a multiple of tk -> zero the OOB tail columns
        tk = x.shape[1]
        col = k * tk + lax.broadcasted_iota(jnp.int32, (1, tk), 1)
        keep = col < d_valid
        x = jnp.where(keep, x, jnp.zeros_like(x))
        w = jnp.where(keep, w, jnp.zeros_like(w))

    # out[m, n] += sum_k x[m, k] * w[n, k]   (nn.Linear: x @ W.T + b)
    o_ref[...] += lax.dot_general(
        x, w,
        dimension_numbers=(((1,), (1,)), ((), ())),
        preferred_element_type=jnp.float32,
    )


def logistic_regression_forward(x, weight, bias, *, x_tile_bytes=8 << 20, tm_cap=512):
    """Forward pass of LogisticRegression.

    Args:
      x:      (B, C, H, W) input (any float dtype; NOT copied or upcast).
      weight: (2, D) nn.Linear weight, D = C*H*W (native layout, no transpose).
      bias:   (2,) bias.

    Returns:
      (B, 2) float32 logits == x.view(B, -1) @ weight.T + bias.
    """
    B = x.shape[0]
    D = math.prod(x.shape[1:])            # static Python int
    x2d = x.reshape(B, D)                 # metadata-only for contiguous input
    w = weight if weight.dtype == x2d.dtype else weight.astype(x2d.dtype)  # tiny
    b2d = bias.reshape(1, 2).astype(jnp.float32)

    itemsize = jnp.dtype(x2d.dtype).itemsize

    # ---- batch tile: multiple of 8; >=2 blocks when B >= 16 (v7x megacore) ----
    bp8 = _round_up(B, 8)
    if B >= 16:
        tm = min(tm_cap, _round_up(-(-bp8 // 2), 8))
    else:
        tm = min(tm_cap, bp8)
    tm = max(tm, 8)

    # ---- reduction tile: fill the VMEM byte budget, lane-multiple of 128 ----
    tk = (x_tile_bytes // (tm * itemsize)) // 128 * 128
    tk = int(max(128, min(tk, _round_up(D, 128))))
    mask_k = (D % tk) != 0                # static: only then emit mask code

    grid = (pl.cdiv(B, tm), pl.cdiv(D, tk))

    # ---- VMEM budget: double-buffered x + w tiles, resident out, bias, slack ----
    vmem_needed = (
        2 * tm * tk * itemsize            # x tiles (double-buffered)
        + 2 * 2 * tk * itemsize           # weight tiles (double-buffered)
        + tm * 2 * 4                      # resident output block (f32)
        + 2 * 2 * 4                       # bias
    )
    vmem_limit = int(min(max(vmem_needed + (2 << 20), 24 << 20), 48 << 20))

    cost = pl.CostEstimate(
        flops=2 * B * D * 2,
        transcendentals=0,
        bytes_accessed=itemsize * (B * D + grid[0] * 2 * D) + 4 * (B * 2 + 2),
    )

    kernel = functools.partial(_linear_kernel, d_valid=D, mask_k=mask_k)

    out = pl.pallas_call(
        kernel,
        out_shape=jax.ShapeDtypeStruct((B, 2), jnp.float32),
        grid_spec=pltpu.PrefetchScalarGridSpec(
            num_scalar_prefetch=0,
            grid=grid,
            in_specs=[
                pl.BlockSpec((tm, tk), lambda i, k: (i, k)),   # x tile
                pl.BlockSpec((2, tk), lambda i, k: (0, k)),    # weight tile (native (2, D) layout)
                pl.BlockSpec((1, 2), lambda i, k: (0, 0)),     # bias
            ],
            out_specs=pl.BlockSpec((tm, 2), lambda i, k: (i, 0)),
        ),
        compiler_params=pltpu.CompilerParams(
            dimension_semantics=("parallel", "arbitrary"),
            vmem_limit_bytes=vmem_limit,
        ),
        cost_estimate=cost,
    )(x2d, w, b2d)

    return out


if __name__ == "__main__":
    key = jax.random.PRNGKey(0)
    kx, kw, kb = jax.random.split(key, 3)

    # Small, module-consistent shapes: batch=2, channels=4, spatial=16x16
    # -> input_size = 4*16*16 = 1024
    B, C, H, W = 2, 4, 16, 16
    D = C * H * W

    x = jax.random.normal(kx, (B, C, H, W), dtype=jnp.float32)
    bound = 1.0 / math.sqrt(D)   # nn.Linear default init range
    weight = jax.random.uniform(kw, (2, D), jnp.float32, -bound, bound)
    bias = jax.random.uniform(kb, (2,), jnp.float32, -bound, bound)

    out = jax.block_until_ready(logistic_regression_forward(x, weight, bias))

    # Correctness check against plain-JAX reference (nn.Linear semantics).
    ref = x.reshape(B, -1) @ weight.T + bias
    assert out.shape == (B, 2)
    assert jnp.allclose(out, ref, atol=1e-5, rtol=1e-5)

    print("KERNEL_OK")
</pallas_src>

<mosaic_0001>
module attributes {stable_mosaic.version = 11 : i64} {
  func.func @_linear_kernel(%arg0: i32, %arg1: i32, %arg2: memref<8x1024xf32, #tpu.memory_space<vmem>>, %arg3: memref<2x1024xf32, #tpu.memory_space<vmem>>, %arg4: memref<1x2xf32, #tpu.memory_space<vmem>>, %arg5: memref<8x2xf32, #tpu.memory_space<vmem>>) attributes {dimension_semantics = [#tpu.dimension_semantics<parallel>, #tpu.dimension_semantics<arbitrary>], iteration_bounds = array<i64: 1, 1>, scalar_prefetch = 0 : i64, scratch_operands = 0 : i64, tpu.core_type = #tpu.core_type<tc>, window_params = [{transform_indices = @transform_0, window_bounds = array<i64: 8, 1024>}, {transform_indices = @transform_1, window_bounds = array<i64: 2, 1024>}, {pipeline_mode = #tpu.pipeline_mode<synchronous>, transform_indices = @transform_2, window_bounds = array<i64: 1, 2>}, {transform_indices = @transform_3, window_bounds = array<i64: 8, 2>}]} {
    %c0_i32 = arith.constant 0 : i32
    %0 = arith.cmpi eq, %arg1, %c0_i32 : i32
    %1 = arith.extui %0 : i1 to i32
    %c0_i32_0 = arith.constant 0 : i32
    %2 = arith.cmpi ne, %1, %c0_i32_0 : i32
    scf.if %2 {
      %c0_8 = arith.constant 0 : index
      %c0_9 = arith.constant 0 : index
      %9 = vector.load %arg4[%c0_8, %c0_9] : memref<1x2xf32, #tpu.memory_space<vmem>>, vector<1x2xf32>
      %10 = vector.shape_cast %9 : vector<1x2xf32> to vector<1x2xf32>
      %11 = vector.broadcast %10 : vector<1x2xf32> to vector<8x2xf32>
      %c0_10 = arith.constant 0 : index
      %c0_11 = arith.constant 0 : index
      %12 = vector.load %arg5[%c0_10, %c0_11] : memref<8x2xf32, #tpu.memory_space<vmem>>, vector<8x2xf32>
      tpu.vector_store %arg5[%c0_10, %c0_11], %11 {strides = array<i32>} : memref<8x2xf32, #tpu.memory_space<vmem>>, vector<8x2xf32>,
    } else {
    }
    %c0 = arith.constant 0 : index
    %c0_1 = arith.constant 0 : index
    %3 = vector.load %arg2[%c0, %c0_1] : memref<8x1024xf32, #tpu.memory_space<vmem>>, vector<8x1024xf32>
    %c0_2 = arith.constant 0 : index
    %c0_3 = arith.constant 0 : index
    %4 = vector.load %arg3[%c0_2, %c0_3] : memref<2x1024xf32, #tpu.memory_space<vmem>>, vector<2x1024xf32>
    %c0_4 = arith.constant 0 : index
    %c0_5 = arith.constant 0 : index
    %5 = vector.load %arg5[%c0_4, %c0_5] : memref<8x2xf32, #tpu.memory_space<vmem>>, vector<8x2xf32>
    %cst = arith.constant dense<0.000000e+00> : vector<8x2xf32>
    %6 = tpu.matmul %3, %4, %cst {dimension_numbers = #tpu.dot_dimension_numbers<[1], [1], [0], [0], [0, 0, 1, 0], [], []>} : vector<8x1024xf32>, vector<2x1024xf32>, vector<8x2xf32> -> vector<8x2xf32>
    %7 = arith.addf %5, %6 : vector<8x2xf32>
    %c0_6 = arith.constant 0 : index
    %c0_7 = arith.constant 0 : index
    %8 = vector.load %arg5[%c0_6, %c0_7] : memref<8x2xf32, #tpu.memory_space<vmem>>, vector<8x2xf32>
    tpu.vector_store %arg5[%c0_6, %c0_7], %7 {strides = array<i32>} : memref<8x2xf32, #tpu.memory_space<vmem>>, vector<8x2xf32>,
    return
  }
  func.func @transform_0(%arg0: i32, %arg1: i32) -> (i32, i32) {
    %c0_i32 = arith.constant 0 : i32
    return %arg0, %arg1 : i32, i32
  }
  func.func @transform_1(%arg0: i32, %arg1: i32) -> (i32, i32) {
    %c0_i32 = arith.constant 0 : i32
    %c0_i32_0 = arith.constant 0 : i32
    return %c0_i32, %arg1 : i32, i32
  }
  func.func @transform_2(%arg0: i32, %arg1: i32) -> (i32, i32) {
    %c0_i32 = arith.constant 0 : i32
    %c0_i32_0 = arith.constant 0 : i32
    %c0_i32_1 = arith.constant 0 : i32
    return %c0_i32, %c0_i32_0 : i32, i32
  }
  func.func @transform_3(%arg0: i32, %arg1: i32) -> (i32, i32) {
    %c0_i32 = arith.constant 0 : i32
    %c0_i32_0 = arith.constant 0 : i32
    return %arg0, %c0_i32 : i32, i32
  }
}

</mosaic_0001>

<llo_original>
// kernel: tpu_custom_call.1
$region0: #{tpu_custom_call.1}
  #allocation0 [shape = 'u32[]', space=smem, size = 0x4, offset = 0x4, fixed_abs, tag = 'smem constant byte address 0x4 - core index']
  #allocation1 [shape = 'u32[144,128]{1,0:T(1,128)}', space=vmem, size = 0x12000, scoped, tag = 'internal scratch']
  %s0 = inlined_call_operand.hbm [shape: f32[2,1024], index: 0, kind: input, shape index: {}]
  %s1 = inlined_call_operand.hbm [shape: f32[2,1024], index: 1, kind: input, shape index: {}]
  %s2 = inlined_call_operand.vmem [shape: f32[1,2], index: 2, kind: input, shape index: {}]
  %s3 = inlined_call_operand.hbm [shape: f32[2,2], index: 3, kind: output, shape index: {}]
  %s4 = sld [smem:[#allocation0]]
  $region34: #{tpu_custom_call.1} parent=0
    _
  %s6 = ssub.s32 1, %s4
  %s7 = scalar_select 0, %s6, %s4
  $region1: #{tpu_custom_call.1} parent=0
    #allocation2 [shape = 'u8[32768]{0}', space=vmem, size = 0x8000, scoped, tag = 'input window, operand 0, single buffered']
    #allocation3 [shape = 's32[1]{0}', space=sflag, size = 0x4, scoped, tag = 'scoped memory for tpu_custom_call.1']
    #allocation4 [shape = 's32[1]{0}', space=sflag, size = 0x4, scoped, tag = 'scoped memory for tpu_custom_call.1']
    #allocation5 [shape = 'u8[8192]{0}', space=vmem, size = 0x2000, scoped, tag = 'input window, operand 1, single buffered']
    #allocation6 [shape = 's32[1]{0}', space=sflag, size = 0x4, scoped, tag = 'scoped memory for tpu_custom_call.1']
    #allocation7 [shape = 'u8[4096]{0}', space=vmem, size = 0x1000, scoped, tag = 'output window, operand 0, single buffered']
    %8 = vsyncpa [#allocation3], 0
    %9 = vsyncpa [#allocation6], 0
    %10 = vsyncpa [#allocation4], 0
    // Predicated region
    $region2: #{tpu_custom_call.1} parent=1 // pred_check
      _
    $region3: #{tpu_custom_call.1} parent=1 // pred_check_branch
      %12 = sbr.rel (0) target = $region5
    $region4: #{tpu_custom_call.1} parent=1 // pred_region
      %s14 = ssub.s32 1024, 256
      %15 = vsyncadd [#allocation3], %s14
      %s16 = sshll.u32 [#allocation2], 4
      %s17 = int_to_ptr.vmem [resolvable:$true] %s16
      %22 = dma.hbm_to_vmem [thread:$0]  %s0, 256, %s17, [#allocation3], 256, 256, 16
    $region5: #{tpu_custom_call.1} parent=1 // pred_fallthru
      _
    // Predicated region
    $region6: #{tpu_custom_call.1} parent=1 // pred_check
      _
    $region7: #{tpu_custom_call.1} parent=1 // pred_check_branch
      %24 = sbr.rel (0) target = $region9
    $region8: #{tpu_custom_call.1} parent=1 // pred_region
      %s26 = ssub.s32 256, 256
      %27 = vsyncadd [#allocation6], %s26
      %s29 = sshll.u32 [#allocation5], 4
      %s30 = int_to_ptr.vmem [resolvable:$true] %s29
      %32 = dma.hbm_to_vmem [thread:$0]  %s1, 256, %s30, [#allocation6]
    $region9: #{tpu_custom_call.1} parent=1 // pred_fallthru
      _
    // Predicated region
    $region10: #{tpu_custom_call.1} parent=1 // pred_check
      _
    $region11: #{tpu_custom_call.1} parent=1 // pred_check_branch
      %34 = sbr.rel (0) target = $region13
    $region12: #{tpu_custom_call.1} parent=1 // pred_region
      _
    $region13: #{tpu_custom_call.1} parent=1 // pred_fallthru
      _
    // Predicated region
    $region14: #{tpu_custom_call.1} parent=1 // pred_check
      _
    $region15: #{tpu_custom_call.1} parent=1 // pred_check_branch
      %36 = sbr.rel (0) target = $region17
    $region16: #{tpu_custom_call.1} parent=1 // pred_region
      %37 = dma.done [#allocation3], 1024
    $region17: #{tpu_custom_call.1} parent=1 // pred_fallthru
      _
    // Predicated region
    $region18: #{tpu_custom_call.1} parent=1 // pred_check
      _
    $region19: #{tpu_custom_call.1} parent=1 // pred_check_branch
      %39 = sbr.rel (0) target = $region21
    $region20: #{tpu_custom_call.1} parent=1 // pred_region
      %40 = dma.done [#allocation6], 256
    $region21: #{tpu_custom_call.1} parent=1 // pred_fallthru
      _
    %p41 = scmp.eq.s32.totalorder 0, 0
    // Predicated region
    $region22: #{tpu_custom_call.1} parent=1 // pred_check
      %p42 = pneg %p41
    $region23: #{tpu_custom_call.1} parent=1 // pred_check_branch
      %44 = sbr.rel (%p42) target = $region25
    $region24: #{tpu_custom_call.1} parent=1 // pred_region
      %v45 = vld [vmem:[%s2] sm:$0x1]
      %v47 = vlaneseq
      %v48 = vshrl.u32 %v47, 7
      %v49 = vsub.s32 0, %v48
      %v50 = vrot.slane %v45, %v49
      %vm52 = vcmask 15360
      %53 = vst.msk [vmem:[#allocation7] sm:$0xff] %vm52, %v50
    $region25: #{tpu_custom_call.1} parent=1 // pred_fallthru
      _
    %v54 = vld [vmem:[#allocation2] sm:$0xff]
    %v55 = vld [vmem:[#allocation2 + $0x8] sm:$0xff]
    %v56 = vld [vmem:[#allocation2 + $0x10] sm:$0xff]
    %v57 = vld [vmem:[#allocation2 + $0x18] sm:$0xff]
    %v58 = vld [vmem:[#allocation2 + $0x20] sm:$0xff]
    %v59 = vld [vmem:[#allocation2 + $0x28] sm:$0xff]
    %v60 = vld [vmem:[#allocation2 + $0x30] sm:$0xff]
    %v61 = vld [vmem:[#allocation2 + $0x38] sm:$0xff]
    %v62 = vld [vmem:[#allocation5] sm:$0xff]
    %v63 = vld [vmem:[#allocation5 + $0x8] sm:$0xff]
    %v64 = vld [vmem:[#allocation7] sm:$0xff]
    %v73 = vcombine.low %v54, %v56
    %v74 = vcombine.high %v54, %v56
    %v75 = vcombine.low %v58, %v60
    %v76 = vcombine.high %v58, %v60
    %v78 = vunpack.c.l.s4 1983009808
    %v79 = vunpack.c.0.s8 %v78
    %v80 = vlaneseq
    %v81 = vshrl.u32 %v80, 7
    %v82 = vsub.s32 %v79, %v81
    %v83 = vrot.slane %v73, %v82
    %v85 = vunpack.c.l.s4 1983009808
    %v86 = vunpack.c.0.s8 %v85
    %v87 = vlaneseq
    %v88 = vshrl.u32 %v87, 7
    %v89 = vsub.s32 %v86, %v88
    %v90 = vrot.slane %v74, %v89
    %v92 = vunpack.c.l.s4 1983009808
    %v93 = vunpack.c.0.s8 %v92
    %v94 = vlaneseq
    %v95 = vshrl.u32 %v94, 7
    %v96 = vsub.s32 %v93, %v95
    %v97 = vrot.slane %v75, %v96
    %v99 = vunpack.c.l.s4 1983009808
    %v100 = vunpack.c.0.s8 %v99
    %v101 = vlaneseq
    %v102 = vshrl.u32 %v101, 7
    %v103 = vsub.s32 %v100, %v102
    %v104 = vrot.slane %v76, %v103
    %v105 = vcombine.low %v83, %v97
    %v106 = vcombine.high %v83, %v97
    %v107 = vcombine.low %v90, %v104
    %v108 = vcombine.high %v90, %v104
    %v109 = vcombine.low %v55, %v57
    %v110 = vcombine.high %v55, %v57
    %v111 = vcombine.low %v59, %v61
    %v112 = vcombine.high %v59, %v61
    %v114 = vunpack.c.l.s4 1983009808
    %v115 = vunpack.c.0.s8 %v114
    %v116 = vlaneseq
    %v117 = vshrl.u32 %v116, 7
    %v118 = vsub.s32 %v115, %v117
    %v119 = vrot.slane %v109, %v118
    %v121 = vunpack.c.l.s4 1983009808
    %v122 = vunpack.c.0.s8 %v121
    %v123 = vlaneseq
    %v124 = vshrl.u32 %v123, 7
    %v125 = vsub.s32 %v122, %v124
    %v126 = vrot.slane %v110, %v125
    %v128 = vunpack.c.l.s4 1983009808
    %v129 = vunpack.c.0.s8 %v128
    %v130 = vlaneseq
    %v131 = vshrl.u32 %v130, 7
    %v132 = vsub.s32 %v129, %v131
    %v133 = vrot.slane %v111, %v132
    %v135 = vunpack.c.l.s4 1983009808
    %v136 = vunpack.c.0.s8 %v135
    %v137 = vlaneseq
    %v138 = vshrl.u32 %v137, 7
    %v139 = vsub.s32 %v136, %v138
    %v140 = vrot.slane %v112, %v139
    %v141 = vcombine.low %v119, %v133
    %v142 = vcombine.high %v119, %v133
    %v143 = vcombine.low %v126, %v140
    %v144 = vcombine.high %v126, %v140
    %v155 = vcombine.high %v62, %v62
    %v157 = vunpack.c.l.s4 1983009808
    %v158 = vunpack.c.0.s8 %v157
    %v159 = vlaneseq
    %v160 = vshrl.u32 %v159, 7
    %v161 = vsub.s32 %v158, %v160
    %v162 = vrot.slane %v62, %v161
    %v164 = vunpack.c.l.s4 1983009808
    %v165 = vunpack.c.0.s8 %v164
    %v166 = vlaneseq
    %v167 = vshrl.u32 %v166, 7
    %v168 = vsub.s32 %v165, %v167
    %v169 = vrot.slane %v155, %v168
    %v170 = vcombine.high %v162, %v162
    %v171 = vcombine.high %v169, %v169
    %v172 = vcombine.high %v63, %v63
    %v174 = vunpack.c.l.s4 1983009808
    %v175 = vunpack.c.0.s8 %v174
    %v176 = vlaneseq
    %v177 = vshrl.u32 %v176, 7
    %v178 = vsub.s32 %v175, %v177
    %v179 = vrot.slane %v63, %v178
    %v181 = vunpack.c.l.s4 1983009808
    %v182 = vunpack.c.0.s8 %v181
    %v183 = vlaneseq
    %v184 = vshrl.u32 %v183, 7
    %v185 = vsub.s32 %v182, %v184
    %v186 = vrot.slane %v172, %v185
    %v187 = vcombine.high %v179, %v179
    %v188 = vcombine.high %v186, %v186
    %197 = vmatprep.subr.mxu0 0.0
    %198 = vmatpush1.xpose.msra.mxu0 0.0
    %199 = vmatprep.subr.mxu0 0.0
    %200 = vmatpush1.xpose.msra.mxu0 0.0
    %201 = vmatprep.subr.mxu0 0.0
    %202 = vmatpush1.xpose.msra.mxu0 0.0
    %203 = vmatprep.subr.mxu0 0.0
    %204 = vmatpush1.xpose.msra.mxu0 0.0
    %205 = vmatprep.subr.mxu0 0.0
    %206 = vmatpush1.xpose.msra.mxu0 0.0
    %207 = vmatprep.subr.mxu0 0.0
    %208 = vmatpush1.xpose.msra.mxu0 0.0
    %209 = vmatprep.subr.mxu0 0.0
    %210 = vmatpush1.xpose.msra.mxu0 0.0
    %211 = vmatprep.subr.mxu0 0.0
    %212 = vmatpush1.xpose.msra.mxu0 0.0
    %213 = vmatprep.subr.mxu0 0.0
    %214 = vmatpush1.xpose.msra.mxu0 0.0
    %215 = vmatprep.subr.mxu0 0.0
    %216 = vmatpush1.xpose.msra.mxu0 0.0
    %217 = vmatprep.subr.mxu0 0.0
    %218 = vmatpush1.xpose.msra.mxu0 0.0
    %219 = vmatprep.subr.mxu0 0.0
    %220 = vmatpush1.xpose.msra.mxu0 0.0
    %221 = vmatprep.subr.mxu0 0.0
    %222 = vmatpush1.xpose.msra.mxu0 0.0
    %223 = vmatprep.subr.mxu0 0.0
    %224 = vmatpush1.xpose.msra.mxu0 0.0
    %225 = vmatprep.subr.mxu0 0.0
    %226 = vmatpush1.xpose.msra.mxu0 0.0
    %227 = vmatprep.subr.mxu0 %v170
    %228 = vmatpush1.xpose.msra.mxu0 %v162
    %229 = vmatprep.subr.mxu0 0.0
    %230 = vmatpush2.xpose.msra.mxu0 0.0
    %231 = vmatprep.subr.mxu0 0.0
    %232 = vmatpush2.xpose.msra.mxu0 0.0
    %233 = vmatprep.subr.mxu0 0.0
    %234 = vmatpush2.xpose.msra.mxu0 0.0
    %235 = vmatprep.subr.mxu0 0.0
    %236 = vmatpush2.xpose.msra.mxu0 0.0
    %237 = vmatprep.subr.mxu0 0.0
    %238 = vmatpush2.xpose.msra.mxu0 0.0
    %239 = vmatprep.subr.mxu0 0.0
    %240 = vmatpush2.xpose.msra.mxu0 0.0
    %241 = vmatprep.subr.mxu0 0.0
    %242 = vmatpush2.xpose.msra.mxu0 0.0
    %243 = vmatprep.subr.mxu0 0.0
    %244 = vmatpush2.xpose.msra.mxu0 0.0
    %245 = vmatprep.subr.mxu0 0.0
    %246 = vmatpush2.xpose.msra.mxu0 0.0
    %247 = vmatprep.subr.mxu0 0.0
    %248 = vmatpush2.xpose.msra.mxu0 0.0
    %249 = vmatprep.subr.mxu0 0.0
    %250 = vmatpush2.xpose.msra.mxu0 0.0
    %251 = vmatprep.subr.mxu0 0.0
    %252 = vmatpush2.xpose.msra.mxu0 0.0
    %253 = vmatprep.subr.mxu0 0.0
    %254 = vmatpush2.xpose.msra.mxu0 0.0
    %255 = vmatprep.subr.mxu0 0.0
    %256 = vmatpush2.xpose.msra.mxu0 0.0
    %257 = vmatprep.subr.mxu0 0.0
    %258 = vmatpush2.xpose.msra.mxu0 0.0
    %259 = vmatprep.subr.mxu0 0.0
    %260 = vmatpush2.xpose.msra.mxu0 0.0
    %261 = vmatprep.mubr.f32.mxu0 %v106
    %262 = vmatmul.mubr.f32.gmra.mxu0 %v105
    %v263 = vpop.f32.mrf.mxu0
    %v264 = vadd.f32 0.0, %v263
    %v265 = vpop.f32.mrf.mxu0
    %266 = vdwg.mxu0
    %267 = vmatprep.subr.mxu0 0.0
    %268 = vmatpush1.xpose.msra.mxu0 0.0
    %269 = vmatprep.subr.mxu0 0.0
    %270 = vmatpush1.xpose.msra.mxu0 0.0
    %271 = vmatprep.subr.mxu0 0.0
    %272 = vmatpush1.xpose.msra.mxu0 0.0
    %273 = vmatprep.subr.mxu0 0.0
    %274 = vmatpush1.xpose.msra.mxu0 0.0
    %275 = vmatprep.subr.mxu0 0.0
    %276 = vmatpush1.xpose.msra.mxu0 0.0
    %277 = vmatprep.subr.mxu0 0.0
    %278 = vmatpush1.xpose.msra.mxu0 0.0
    %279 = vmatprep.subr.mxu0 0.0
    %280 = vmatpush1.xpose.msra.mxu0 0.0
    %281 = vmatprep.subr.mxu0 0.0
    %282 = vmatpush1.xpose.msra.mxu0 0.0
    %283 = vmatprep.subr.mxu0 0.0
    %284 = vmatpush1.xpose.msra.mxu0 0.0
    %285 = vmatprep.subr.mxu0 0.0
    %286 = vmatpush1.xpose.msra.mxu0 0.0
    %287 = vmatprep.subr.mxu0 0.0
    %288 = vmatpush1.xpose.msra.mxu0 0.0
    %289 = vmatprep.subr.mxu0 0.0
    %290 = vmatpush1.xpose.msra.mxu0 0.0
    %291 = vmatprep.subr.mxu0 0.0
    %292 = vmatpush1.xpose.msra.mxu0 0.0
    %293 = vmatprep.subr.mxu0 0.0
    %294 = vmatpush1.xpose.msra.mxu0 0.0
    %295 = vmatprep.subr.mxu0 0.0
    %296 = vmatpush1.xpose.msra.mxu0 0.0
    %297 = vmatprep.subr.mxu0 %v171
    %298 = vmatpush1.xpose.msra.mxu0 %v169
    %299 = vmatprep.subr.mxu0 0.0
    %300 = vmatpush2.xpose.msra.mxu0 0.0
    %301 = vmatprep.subr.mxu0 0.0
    %302 = vmatpush2.xpose.msra.mxu0 0.0
    %303 = vmatprep.subr.mxu0 0.0
    %304 = vmatpush2.xpose.msra.mxu0 0.0
    %305 = vmatprep.subr.mxu0 0.0
    %306 = vmatpush2.xpose.msra.mxu0 0.0
    %307 = vmatprep.subr.mxu0 0.0
    %308 = vmatpush2.xpose.msra.mxu0 0.0
    %309 = vmatprep.subr.mxu0 0.0
    %310 = vmatpush2.xpose.msra.mxu0 0.0
    %311 = vmatprep.subr.mxu0 0.0
    %312 = vmatpush2.xpose.msra.mxu0 0.0
    %313 = vmatprep.subr.mxu0 0.0
    %314 = vmatpush2.xpose.msra.mxu0 0.0
    %315 = vmatprep.subr.mxu0 0.0
    %316 = vmatpush2.xpose.msra.mxu0 0.0
    %317 = vmatprep.subr.mxu0 0.0
    %318 = vmatpush2.xpose.msra.mxu0 0.0
    %319 = vmatprep.subr.mxu0 0.0
    %320 = vmatpush2.xpose.msra.mxu0 0.0
    %321 = vmatprep.subr.mxu0 0.0
    %322 = vmatpush2.xpose.msra.mxu0 0.0
    %323 = vmatprep.subr.mxu0 0.0
    %324 = vmatpush2.xpose.msra.mxu0 0.0
    %325 = vmatprep.subr.mxu0 0.0
    %326 = vmatpush2.xpose.msra.mxu0 0.0
    %327 = vmatprep.subr.mxu0 0.0
    %328 = vmatpush2.xpose.msra.mxu0 0.0
    %329 = vmatprep.subr.mxu0 0.0
    %330 = vmatpush2.xpose.msra.mxu0 0.0
    %331 = vmatprep.mubr.f32.mxu0 %v108
    %332 = vmatmul.mubr.f32.gmra.mxu0 %v107
    %v333 = vpop.f32.mrf.mxu0
    %v334 = vadd.f32 %v264, %v333
    %v335 = vpop.f32.mrf.mxu0
    %336 = vdwg.mxu0
    %337 = vmatprep.subr.mxu0 0.0
    %338 = vmatpush1.xpose.msra.mxu0 0.0
    %339 = vmatprep.subr.mxu0 0.0
    %340 = vmatpush1.xpose.msra.mxu0 0.0
    %341 = vmatprep.subr.mxu0 0.0
    %342 = vmatpush1.xpose.msra.mxu0 0.0
    %343 = vmatprep.subr.mxu0 0.0
    %344 = vmatpush1.xpose.msra.mxu0 0.0
    %345 = vmatprep.subr.mxu0 0.0
    %346 = vmatpush1.xpose.msra.mxu0 0.0
    %347 = vmatprep.subr.mxu0 0.0
    %348 = vmatpush1.xpose.msra.mxu0 0.0
    %349 = vmatprep.subr.mxu0 0.0
    %350 = vmatpush1.xpose.msra.mxu0 0.0
    %351 = vmatprep.subr.mxu0 0.0
    %352 = vmatpush1.xpose.msra.mxu0 0.0
    %353 = vmatprep.subr.mxu0 0.0
    %354 = vmatpush1.xpose.msra.mxu0 0.0
    %355 = vmatprep.subr.mxu0 0.0
    %356 = vmatpush1.xpose.msra.mxu0 0.0
    %357 = vmatprep.subr.mxu0 0.0
    %358 = vmatpush1.xpose.msra.mxu0 0.0
    %359 = vmatprep.subr.mxu0 0.0
    %360 = vmatpush1.xpose.msra.mxu0 0.0
    %361 = vmatprep.subr.mxu0 0.0
    %362 = vmatpush1.xpose.msra.mxu0 0.0
    %363 = vmatprep.subr.mxu0 0.0
    %364 = vmatpush1.xpose.msra.mxu0 0.0
    %365 = vmatprep.subr.mxu0 0.0
    %366 = vmatpush1.xpose.msra.mxu0 0.0
    %367 = vmatprep.subr.mxu0 %v187
    %368 = vmatpush1.xpose.msra.mxu0 %v179
    %369 = vmatprep.subr.mxu0 0.0
    %370 = vmatpush2.xpose.msra.mxu0 0.0
    %371 = vmatprep.subr.mxu0 0.0
    %372 = vmatpush2.xpose.msra.mxu0 0.0
    %373 = vmatprep.subr.mxu0 0.0
    %374 = vmatpush2.xpose.msra.mxu0 0.0
    %375 = vmatprep.subr.mxu0 0.0
    %376 = vmatpush2.xpose.msra.mxu0 0.0
    %377 = vmatprep.subr.mxu0 0.0
    %378 = vmatpush2.xpose.msra.mxu0 0.0
    %379 = vmatprep.subr.mxu0 0.0
    %380 = vmatpush2.xpose.msra.mxu0 0.0
    %381 = vmatprep.subr.mxu0 0.0
    %382 = vmatpush2.xpose.msra.mxu0 0.0
    %383 = vmatprep.subr.mxu0 0.0
    %384 = vmatpush2.xpose.msra.mxu0 0.0
    %385 = vmatprep.subr.mxu0 0.0
    %386 = vmatpush2.xpose.msra.mxu0 0.0
    %387 = vmatprep.subr.mxu0 0.0
    %388 = vmatpush2.xpose.msra.mxu0 0.0
    %389 = vmatprep.subr.mxu0 0.0
    %390 = vmatpush2.xpose.msra.mxu0 0.0
    %391 = vmatprep.subr.mxu0 0.0
    %392 = vmatpush2.xpose.msra.mxu0 0.0
    %393 = vmatprep.subr.mxu0 0.0
    %394 = vmatpush2.xpose.msra.mxu0 0.0
    %395 = vmatprep.subr.mxu0 0.0
    %396 = vmatpush2.xpose.msra.mxu0 0.0
    %397 = vmatprep.subr.mxu0 0.0
    %398 = vmatpush2.xpose.msra.mxu0 0.0
    %399 = vmatprep.subr.mxu0 0.0
    %400 = vmatpush2.xpose.msra.mxu0 0.0
    %401 = vmatprep.mubr.f32.mxu0 %v142
    %402 = vmatmul.mubr.f32.gmra.mxu0 %v141
    %v403 = vpop.f32.mrf.mxu0
    %v404 = vadd.f32 %v334, %v403
    %v405 = vpop.f32.mrf.mxu0
    %406 = vdwg.mxu0
    %407 = vmatprep.subr.mxu0 0.0
    %408 = vmatpush1.xpose.msra.mxu0 0.0
    %409 = vmatprep.subr.mxu0 0.0
    %410 = vmatpush1.xpose.msra.mxu0 0.0
    %411 = vmatprep.subr.mxu0 0.0
    %412 = vmatpush1.xpose.msra.mxu0 0.0
    %413 = vmatprep.subr.mxu0 0.0
    %414 = vmatpush1.xpose.msra.mxu0 0.0
    %415 = vmatprep.subr.mxu0 0.0
    %416 = vmatpush1.xpose.msra.mxu0 0.0
    %417 = vmatprep.subr.mxu0 0.0
    %418 = vmatpush1.xpose.msra.mxu0 0.0
    %419 = vmatprep.subr.mxu0 0.0
    %420 = vmatpush1.xpose.msra.mxu0 0.0
    %421 = vmatprep.subr.mxu0 0.0
    %422 = vmatpush1.xpose.msra.mxu0 0.0
    %423 = vmatprep.subr.mxu0 0.0
    %424 = vmatpush1.xpose.msra.mxu0 0.0
    %425 = vmatprep.subr.mxu0 0.0
    %426 = vmatpush1.xpose.msra.mxu0 0.0
    %427 = vmatprep.subr.mxu0 0.0
    %428 = vmatpush1.xpose.msra.mxu0 0.0
    %429 = vmatprep.subr.mxu0 0.0
    %430 = vmatpush1.xpose.msra.mxu0 0.0
    %431 = vmatprep.subr.mxu0 0.0
    %432 = vmatpush1.xpose.msra.mxu0 0.0
    %433 = vmatprep.subr.mxu0 0.0
    %434 = vmatpush1.xpose.msra.mxu0 0.0
    %435 = vmatprep.subr.mxu0 0.0
    %436 = vmatpush1.xpose.msra.mxu0 0.0
    %437 = vmatprep.subr.mxu0 %v188
    %438 = vmatpush1.xpose.msra.mxu0 %v186
    %439 = vmatprep.subr.mxu0 0.0
    %440 = vmatpush2.xpose.msra.mxu0 0.0
    %441 = vmatprep.subr.mxu0 0.0
    %442 = vmatpush2.xpose.msra.mxu0 0.0
    %443 = vmatprep.subr.mxu0 0.0
    %444 = vmatpush2.xpose.msra.mxu0 0.0
    %445 = vmatprep.subr.mxu0 0.0
    %446 = vmatpush2.xpose.msra.mxu0 0.0
    %447 = vmatprep.subr.mxu0 0.0
    %448 = vmatpush2.xpose.msra.mxu0 0.0
    %449 = vmatprep.subr.mxu0 0.0
    %450 = vmatpush2.xpose.msra.mxu0 0.0
    %451 = vmatprep.subr.mxu0 0.0
    %452 = vmatpush2.xpose.msra.mxu0 0.0
    %453 = vmatprep.subr.mxu0 0.0
    %454 = vmatpush2.xpose.msra.mxu0 0.0
    %455 = vmatprep.subr.mxu0 0.0
    %456 = vmatpush2.xpose.msra.mxu0 0.0
    %457 = vmatprep.subr.mxu0 0.0
    %458 = vmatpush2.xpose.msra.mxu0 0.0
    %459 = vmatprep.subr.mxu0 0.0
    %460 = vmatpush2.xpose.msra.mxu0 0.0
    %461 = vmatprep.subr.mxu0 0.0
    %462 = vmatpush2.xpose.msra.mxu0 0.0
    %463 = vmatprep.subr.mxu0 0.0
    %464 = vmatpush2.xpose.msra.mxu0 0.0
    %465 = vmatprep.subr.mxu0 0.0
    %466 = vmatpush2.xpose.msra.mxu0 0.0
    %467 = vmatprep.subr.mxu0 0.0
    %468 = vmatpush2.xpose.msra.mxu0 0.0
    %469 = vmatprep.subr.mxu0 0.0
    %470 = vmatpush2.xpose.msra.mxu0 0.0
    %471 = vmatprep.mubr.f32.mxu0 %v144
    %472 = vmatmul.mubr.f32.gmra.mxu0 %v143
    %v473 = vpop.f32.mrf.mxu0
    %v474 = vadd.f32 %v404, %v473
    %v475 = vpop.f32.mrf.mxu0
    %476 = vdwg.mxu0
    %v477 = vadd.f32 %v64, %v474
    %vm478 = vcmask 15360
    %479 = vst.msk [vmem:[#allocation7] sm:$0xff] %vm478, %v477
    // Predicated region
    $region26: #{tpu_custom_call.1} parent=1 // pred_check
      _
    $region27: #{tpu_custom_call.1} parent=1 // pred_check_branch
      %481 = sbr.rel (0) target = $region29
    $region28: #{tpu_custom_call.1} parent=1 // pred_region
      %s483 = ssub.s32 128, 32
      %484 = vsyncadd [#allocation4], %s483
      %s485 = sshll.u32 [#allocation7], 4
      %s486 = int_to_ptr.vmem [resolvable:$true] %s485
      %491 = dma.vmem_to_hbm [thread:$0]  %s486, 32, %s3, [#allocation4], 32, 32, 2
    $region29: #{tpu_custom_call.1} parent=1 // pred_fallthru
      _
    // Predicated region
    $region30: #{tpu_custom_call.1} parent=1 // pred_check
      _
    $region31: #{tpu_custom_call.1} parent=1 // pred_check_branch
      %493 = sbr.rel (0) target = $region33
    $region32: #{tpu_custom_call.1} parent=1 // pred_region
      %494 = dma.done [#allocation4], 128
    $region33: #{tpu_custom_call.1} parent=1 // pred_fallthru
      _
    %495 = vsyncpa [#allocation3], 1
    %496 = vsyncpa [#allocation6], 1
    %497 = vsyncpa [#allocation4], 1

</llo_original>
